<compile_context>
chip_gen: v5e
topology: v5e:2x2
jax: 0.10.0
libtpu: 0.0.40
codegen_flags: <defaults>
</compile_context>

<pallas_src>
import functools

import jax
import jax.numpy as jnp
import numpy as np
from jax.experimental import pallas as pl
from jax.experimental.pallas import tpu as pltpu

F32 = jnp.float32
BF16 = jnp.bfloat16
NEG = -1e30          # finite sentinel: exp(NEG - reasonable) == 0.0 exactly, never inf/NaN


def _round_up(x, m):
    return (x + m - 1) // m * m


def _pad2(a, rows, cols):
    return jnp.pad(a, ((0, rows - a.shape[0]), (0, cols - a.shape[1])))


def _pad_gates(a, D, Dp, rows):
    """Pad a (R, 3*D) GRU tensor to (rows, 3*Dp), preserving the (r|z|n) gate layout."""
    blocks = [_pad2(a[:, g * D:(g + 1) * D], rows, Dp) for g in range(3)]
    return jnp.concatenate(blocks, axis=1)


def _vmem_block_bytes(shape, itemsize):
    """VMEM bytes of one pipeline buffer of this block (sublane/lane tile padding)."""
    sub = 8 * (4 // itemsize)              # f32 -> 8 sublanes, bf16 -> 16
    r, c = shape[-2], shape[-1]
    return _round_up(r, sub) * _round_up(c, 128) * itemsize


def _vmem_cap_bytes():
    try:
        info = pltpu.get_tpu_info()
        for attr in ("vmem_capacity_bytes", "vmem_bytes", "vmem_capacity"):
            v = getattr(info, attr, None)
            if v:
                return int(v)
    except Exception:
        pass
    return 64 * 1024 * 1024                # conservative (v7x per-core VMEM)


# ---------------------------------------------------------------------------
# Pallas kernel: one directional wavefront pass (forward or backward).
# grid = (L,) -- one sequential grid step per topological level; the node state
# h stays resident in VMEM across levels (constant-index output BlockSpec).
# ---------------------------------------------------------------------------
def dag_pass_kernel(h_init_ref, gi_ref, wk_ref, whh_ref, bhh_ref,
                    j_ref, iT_ref, aconst_ref, h_ref, *, d):
    Dw = h_ref.shape[1]
    lvl = pl.program_id(0)

    @pl.when(lvl == 0)
    def _init():
        # root nodes already initialised (GRUCell with zero hidden) in the wrapper
        h_ref[...] = h_init_ref[...]

    h_cur = h_ref[...]                                   # (Np, Dw) f32, resident
    col = jax.lax.broadcasted_iota(jnp.int32, (1, Dw), 1)

    # fold the Wk projection into the gather: column d of h_ext carries h . wk
    # (N*D VPU work instead of E*D; padding columns of h_cur are zeroed here)
    hk = jnp.sum(h_cur * wk_ref[...], axis=-1, keepdims=True)            # (Np, 1)
    h_ext = jnp.where(col == d, hk, jnp.where(col < d, h_cur, 0.0))      # (Np, Dw)

    # gather this level's message sources + their Wk projection in one bf16 MXU pass
    hj = jnp.dot(j_ref[...], h_ext.astype(BF16),
                 preferred_element_type=F32)                             # (Emax, Dw)

    # attention logits; padding slots carry aconst = -1e30 so exp underflows to exact 0
    alpha = aconst_ref[...] + jnp.sum(jnp.where(col == d, hj, 0.0),
                                      axis=-1, keepdims=True)            # (Emax, 1)
    gmax = jnp.max(alpha, axis=0, keepdims=True)     # level-global shift (exact for ratios)
    ex = jnp.exp(alpha - gmax)                                           # (Emax, 1)

    # payload [ex*h_j | . | ex | 1]: one f32 scatter matmul yields num | denom | degree
    pay = (ex * hj
           + jnp.where(col == d + 1, ex, 0.0)
           + jnp.where(col == d + 2, 1.0, 0.0))                          # (Emax, Dw)
    sc = jnp.dot(iT_ref[...], pay, preferred_element_type=F32)           # (Np, Dw)
    denom = jnp.sum(jnp.where(col == d + 1, sc, 0.0), axis=-1, keepdims=True)
    deg = jnp.sum(jnp.where(col == d + 2, sc, 0.0), axis=-1, keepdims=True)
    msg = sc / (denom + 1e-16)       # columns >= d are junk but never reach real outputs

    # combine: GRUCell(input=h_prev, hidden=msg); gi = h_prev@Wih + bih is precomputed
    gi = gi_ref[...]                                                     # (Np, 3*Dw)
    gh = jnp.dot(msg.astype(BF16), whh_ref[...],
                 preferred_element_type=F32) + bhh_ref[...]              # (Np, 3*Dw)
    r = jax.nn.sigmoid(gi[:, :Dw] + gh[:, :Dw])
    z = jax.nn.sigmoid(gi[:, Dw:2 * Dw] + gh[:, Dw:2 * Dw])
    n = jnp.tanh(gi[:, 2 * Dw:] + r * gh[:, 2 * Dw:])
    hnew = (1.0 - z) * n + z * msg

    # only nodes receiving an active edge this level are updated (degree from the scatter)
    h_ref[...] = jnp.where(deg > 0.5, hnew, h_cur)


# ---------------------------------------------------------------------------
# Level-invariant preprocessing + host-side level compaction (runs once per pass)
# ---------------------------------------------------------------------------
def precompute_pass(h_prev, root_mask, edge_attr, j_idx, i_idx, em, params):
    """j_idx: message-source endpoint per edge; i_idx: aggregation-target endpoint.
    em: (L, E) numpy bool level masks (topology, concrete)."""
    we, be, wq, wk, ba, wih, whh, bih, bhh = params
    N, D = h_prev.shape
    L, E = em.shape

    # --- level-invariant node math: GRU input gates + root initialisation ---
    gi = h_prev @ wih + bih                                      # (N, 3D), reused per level
    r0 = jax.nn.sigmoid(gi[:, :D] + bhh[:, :D])
    z0 = jax.nn.sigmoid(gi[:, D:2 * D] + bhh[:, D:2 * D])
    n0 = jnp.tanh(gi[:, 2 * D:] + r0 * bhh[:, 2 * D:])
    h_init = jnp.where(root_mask > 0, (1.0 - z0) * n0, 0.0)      # (N, D)

    # --- level-invariant edge math: alpha = h_prev[i]@Wq + (h[j]+eemb)@Wk + b ---
    eemb = edge_attr @ we + be                                   # (E, D)
    aconst_e = (h_prev @ wq)[i_idx] + eemb @ wk + ba             # (E, 1)

    # --- host-side per-level compaction (topology only) ---
    counts = em.sum(axis=1)
    Emax = _round_up(max(int(counts.max()), 1), 16)
    Np = _round_up(N, 16)
    Dw = _round_up(D + 3, 128)      # extra lane cols: D -> h.wk, D+1 -> ex/denom, D+2 -> deg

    sel = np.zeros((L, Emax), np.int32)
    valid = np.zeros((L, Emax), np.bool_)
    j_lvl = np.zeros((L, Emax, Np), np.float32)      # per-level source one-hot
    iT_lvl = np.zeros((L, Np, Emax), np.float32)     # per-level target one-hot, transposed
    for l in range(L):
        ids = np.nonzero(em[l])[0]
        k = len(ids)
        sel[l, :k] = ids
        valid[l, :k] = True
        j_lvl[l, np.arange(k), j_idx[ids]] = 1.0
        iT_lvl[l, i_idx[ids], np.arange(k)] = 1.0

    aconst_lvl = jnp.where(
        jnp.asarray(valid)[:, :, None],
        jnp.take(aconst_e, sel.reshape(-1), axis=0).reshape(L, Emax, 1),
        NEG)                                                     # padding slots -> -1e30

    # --- pad the resident node-state operands ---
    h_init_p = _pad2(h_init, Np, Dw)
    gi_p = _pad_gates(gi, D, Dw, Np)
    wk_p = _pad2(wk.T, 1, Dw)
    whh_p = _pad_gates(whh, D, Dw, Dw).astype(BF16)
    bhh_p = _pad_gates(bhh, D, Dw, 1)

    dims = (N, D, Np, Dw, Emax, L)
    return (h_init_p, gi_p, wk_p, whh_p, bhh_p,
            jnp.asarray(j_lvl, BF16), jnp.asarray(iT_lvl), aconst_lvl, dims)


# ---------------------------------------------------------------------------
# Pallas-backed directional pass
# ---------------------------------------------------------------------------
def run_pass_pallas(pre):
    (h_init, gi, wk, whh, bhh, j_lvl, iT_lvl, aconst_lvl, dims) = pre
    N, D, Np, Dw, Emax, L = dims

    inv = lambda shape: pl.BlockSpec(shape, lambda l: (0, 0))             # level-invariant
    lvl = lambda shape: pl.BlockSpec((None,) + shape, lambda l: (l, 0, 0))  # streamed/level

    in_specs = [
        inv((Np, Dw)),           # h_init
        inv((Np, 3 * Dw)),       # gi = h_prev@Wih + bih
        inv((1, Dw)),            # Wk row (zero beyond D)
        inv((Dw, 3 * Dw)),       # GRU W_hh^T (bf16, zero rows beyond D)
        inv((1, 3 * Dw)),        # GRU b_hh
        lvl((Emax, Np)),         # this level's source one-hot (bf16)
        lvl((Np, Emax)),         # this level's target one-hot, pre-transposed (f32)
        lvl((Emax, 1)),          # this level's alpha_const (padding slots = -1e30)
    ]
    out_spec = pl.BlockSpec((Np, Dw), lambda l: (0, 0))    # h resident in VMEM across levels

    # exact double-buffered VMEM footprint, clamped to physical capacity - 8 MiB headroom
    blk_bytes = (_vmem_block_bytes((Np, Dw), 4) + _vmem_block_bytes((Np, 3 * Dw), 4)
                 + _vmem_block_bytes((1, Dw), 4) + _vmem_block_bytes((Dw, 3 * Dw), 2)
                 + _vmem_block_bytes((1, 3 * Dw), 4)
                 + _vmem_block_bytes((Emax, Np), 2) + _vmem_block_bytes((Np, Emax), 4)
                 + _vmem_block_bytes((Emax, 1), 4)
                 + _vmem_block_bytes((Np, Dw), 4))               # output accumulator
    want = max(2 * blk_bytes + (2 << 20), 32 << 20)
    vmem_limit = int(max(4 << 20, min(want, _vmem_cap_bytes() - (8 << 20))))

    h_out = pl.pallas_call(
        functools.partial(dag_pass_kernel, d=D),
        out_shape=jax.ShapeDtypeStruct((Np, Dw), F32),
        grid_spec=pltpu.PrefetchScalarGridSpec(
            num_scalar_prefetch=0,
            grid=(L,),
            in_specs=in_specs,
            out_specs=out_spec),
        compiler_params=pltpu.CompilerParams(
            dimension_semantics=("arbitrary",),   # wavefront levels are sequential
            vmem_limit_bytes=vmem_limit),
    )(h_init, gi, wk, whh, bhh, j_lvl, iT_lvl, aconst_lvl)

    return h_out[:N, :D]


# ---------------------------------------------------------------------------
# Pure-JAX reference for the same directional pass (no Pallas)
# ---------------------------------------------------------------------------
def run_pass_ref(pre):
    (h_init, gi, wk, whh, bhh, j_lvl, iT_lvl, aconst_lvl, dims) = pre
    N, D, Np, Dw, Emax, L = dims
    col = jnp.arange(Dw)[None, :]
    h = h_init
    for l in range(L):
        hk = jnp.sum(h * wk, axis=-1, keepdims=True)
        h_ext = jnp.where(col == D, hk, jnp.where(col < D, h, 0.0))
        hj = jnp.dot(j_lvl[l], h_ext.astype(BF16), preferred_element_type=F32)
        alpha = aconst_lvl[l] + hj[:, D:D + 1]
        gmax = jnp.max(alpha, axis=0, keepdims=True)
        ex = jnp.exp(alpha - gmax)
        pay = (ex * hj + jnp.where(col == D + 1, ex, 0.0)
               + jnp.where(col == D + 2, 1.0, 0.0))
        sc = jnp.dot(iT_lvl[l], pay, preferred_element_type=F32)
        denom = sc[:, D + 1:D + 2]
        deg = sc[:, D + 2:D + 3]
        msg = sc / (denom + 1e-16)
        gh = jnp.dot(msg.astype(BF16), whh, preferred_element_type=F32) + bhh
        r = jax.nn.sigmoid(gi[:, :Dw] + gh[:, :Dw])
        z = jax.nn.sigmoid(gi[:, Dw:2 * Dw] + gh[:, Dw:2 * Dw])
        n = jnp.tanh(gi[:, 2 * Dw:] + r * gh[:, 2 * Dw:])
        hnew = (1.0 - z) * n + z * msg
        h = jnp.where(deg > 0.5, hnew, h)
    return h[:N, :D]


# ---------------------------------------------------------------------------
# DAGLayer glue (bidirectional, flow_type='fnb', dropout = identity / inference)
# ---------------------------------------------------------------------------
def dag_layer_forward(x, edge_index, edge_attr, edge_masks, params_fwd, params_bwd,
                      use_pallas=True):
    N = x.shape[0]
    ei = np.asarray(edge_index)
    em = np.asarray(edge_masks).astype(bool)
    src, dst = ei[0], ei[1]
    run = run_pass_pallas if use_pallas else run_pass_ref

    # forward wavefront: messages flow src -> dst (j = src, i = dst); roots = no in-edge
    root_f = jnp.asarray(np.bincount(dst, minlength=N) == 0, F32)[:, None]
    pre_f = precompute_pass(x, root_f, edge_attr, src, dst, em, params_fwd)
    h_forward = run(pre_f)

    # backward wavefront ('fnb'): h_prev := h_forward, reversed levels, j = dst, i = src
    root_b = jnp.asarray(np.bincount(src, minlength=N) == 0, F32)[:, None]
    pre_b = precompute_pass(h_forward, root_b, edge_attr, dst, src, em[::-1], params_bwd)
    h_backward = run(pre_b)

    return jax.nn.relu(h_backward)


def init_attn_gru_params(key, emb_dim, edge_dim, scale=0.1):
    ks = jax.random.split(key, 9)
    D, De = emb_dim, edge_dim
    we = scale * jax.random.normal(ks[0], (De, D), F32)
    be = scale * jax.random.normal(ks[1], (1, D), F32)
    wq = scale * jax.random.normal(ks[2], (D, 1), F32)
    wk = scale * jax.random.normal(ks[3], (D, 1), F32)
    ba = scale * jax.random.normal(ks[4], (1, 1), F32)
    wih = scale * jax.random.normal(ks[5], (D, 3 * D), F32)
    whh = scale * jax.random.normal(ks[6], (D, 3 * D), F32)
    bih = scale * jax.random.normal(ks[7], (1, 3 * D), F32)
    bhh = scale * jax.random.normal(ks[8], (1, 3 * D), F32)
    return (we, be, wq, wk, ba, wih, whh, bih, bhh)


# ---------------------------------------------------------------------------
if __name__ == "__main__":
    # small layered DAG: 4 groups of 4 nodes, fully connected between consecutive groups
    N, D = 16, 32            # in_dim == emb_dim (required by the GRUCell wiring)
    De = D                   # edge_attr dim (DAGLayer passes emb_dim as num_edge_attr)
    groups = [list(range(4 * g, 4 * g + 4)) for g in range(4)]
    src_list, dst_list, lvl_of_edge = [], [], []
    for g in range(3):
        for u in groups[g]:
            for v in groups[g + 1]:
                src_list.append(u)
                dst_list.append(v)
                lvl_of_edge.append(g)
    E, L = len(src_list), 3
    edge_index = jnp.array([src_list, dst_list], dtype=jnp.int32)           # (2, E)
    edge_masks = jnp.array(
        [[lvl_of_edge[e] == l for e in range(E)] for l in range(L)],
        dtype=bool)                                                          # (L, E)

    key = jax.random.PRNGKey(0)
    kx, ke, kf, kb = jax.random.split(key, 4)
    x = jax.random.normal(kx, (N, D), F32)
    edge_attr = jax.random.normal(ke, (E, De), F32)
    params_fwd = init_attn_gru_params(kf, D, De)   # agg_forward + combine_forward
    params_bwd = init_attn_gru_params(kb, D, De)   # agg_backward + combine_backward

    out = dag_layer_forward(x, edge_index, edge_attr, edge_masks,
                            params_fwd, params_bwd, use_pallas=True)
    out = jax.block_until_ready(out)

    ref = jax.block_until_ready(
        dag_layer_forward(x, edge_index, edge_attr, edge_masks,
                          params_fwd, params_bwd, use_pallas=False))
    np.testing.assert_allclose(np.asarray(out), np.asarray(ref), rtol=5e-3, atol=5e-3)

    print("KERNEL_OK")
</pallas_src>

<mosaic_0001>
module attributes {stable_mosaic.version = 11 : i64} {
  func.func @dag_pass_kernel(%arg0: i32, %arg1: memref<16x128xf32, #tpu.memory_space<vmem>>, %arg2: memref<16x384xf32, #tpu.memory_space<vmem>>, %arg3: memref<1x128xf32, #tpu.memory_space<vmem>>, %arg4: memref<128x384xbf16, #tpu.memory_space<vmem>>, %arg5: memref<1x384xf32, #tpu.memory_space<vmem>>, %arg6: memref<1x16x16xbf16, #tpu.memory_space<vmem>>, %arg7: memref<1x16x16xf32, #tpu.memory_space<vmem>>, %arg8: memref<1x16x1xf32, #tpu.memory_space<vmem>>, %arg9: memref<16x128xf32, #tpu.memory_space<vmem>>) attributes {dimension_semantics = [#tpu.dimension_semantics<arbitrary>], iteration_bounds = array<i64: 3>, scalar_prefetch = 0 : i64, scratch_operands = 0 : i64, tpu.core_type = #tpu.core_type<tc>, window_params = [{pipeline_mode = #tpu.pipeline_mode<synchronous>, transform_indices = @transform_0, window_bounds = array<i64: 16, 128>}, {pipeline_mode = #tpu.pipeline_mode<synchronous>, transform_indices = @transform_1, window_bounds = array<i64: 16, 384>}, {pipeline_mode = #tpu.pipeline_mode<synchronous>, transform_indices = @transform_2, window_bounds = array<i64: 1, 128>}, {pipeline_mode = #tpu.pipeline_mode<synchronous>, transform_indices = @transform_3, window_bounds = array<i64: 128, 384>}, {pipeline_mode = #tpu.pipeline_mode<synchronous>, transform_indices = @transform_4, window_bounds = array<i64: 1, 384>}, {transform_indices = @transform_5, window_bounds = array<i64: 1, 16, 16>}, {transform_indices = @transform_6, window_bounds = array<i64: 1, 16, 16>}, {transform_indices = @transform_7, window_bounds = array<i64: 1, 16, 1>}, {pipeline_mode = #tpu.pipeline_mode<synchronous>, transform_indices = @transform_8, window_bounds = array<i64: 16, 128>}]} {
    %c0_i32 = arith.constant 0 : i32
    %0 = arith.cmpi eq, %arg0, %c0_i32 : i32
    %1 = arith.extui %0 : i1 to i32
    %c0_i32_0 = arith.constant 0 : i32
    %2 = arith.cmpi ne, %1, %c0_i32_0 : i32
    scf.if %2 {
      %c0_44 = arith.constant 0 : index
      %c0_45 = arith.constant 0 : index
      %123 = vector.load %arg1[%c0_44, %c0_45] : memref<16x128xf32, #tpu.memory_space<vmem>>, vector<16x128xf32>
      %c0_46 = arith.constant 0 : index
      %c0_47 = arith.constant 0 : index
      %124 = vector.load %arg9[%c0_46, %c0_47] : memref<16x128xf32, #tpu.memory_space<vmem>>, vector<16x128xf32>
      tpu.vector_store %arg9[%c0_46, %c0_47], %123 {strides = array<i32>} : memref<16x128xf32, #tpu.memory_space<vmem>>, vector<16x128xf32>,
    } else {
    }
    %c0 = arith.constant 0 : index
    %c0_1 = arith.constant 0 : index
    %3 = vector.load %arg9[%c0, %c0_1] : memref<16x128xf32, #tpu.memory_space<vmem>>, vector<16x128xf32>
    %4 = tpu.iota {dimensions = array<i32: 1>} : vector<1x128xi32>
    %c0_2 = arith.constant 0 : index
    %c0_3 = arith.constant 0 : index
    %5 = vector.load %arg3[%c0_2, %c0_3] : memref<1x128xf32, #tpu.memory_space<vmem>>, vector<1x128xf32>
    %6 = vector.broadcast %5 : vector<1x128xf32> to vector<16x128xf32>
    %7 = arith.mulf %3, %6 : vector<16x128xf32>
    %cst = arith.constant dense<0.000000e+00> : vector<16xf32>
    %8 = vector.multi_reduction <add>, %7, %cst [1] : vector<16x128xf32> to vector<16xf32>
    %9 = vector.shape_cast %8 : vector<16xf32> to vector<16x1xf32>
    %c32_i32 = arith.constant 32 : i32
    %10 = vector.broadcast %c32_i32 : i32 to vector<1x128xi32>
    %11 = arith.cmpi eq, %4, %10 : vector<1x128xi32>
    %c32_i32_4 = arith.constant 32 : i32
    %12 = vector.broadcast %c32_i32_4 : i32 to vector<1x128xi32>
    %13 = arith.cmpi slt, %4, %12 : vector<1x128xi32>
    %cst_5 = arith.constant 0.000000e+00 : f32
    %14 = vector.shape_cast %13 : vector<1x128xi1> to vector<1x128xi1>
    %15 = vector.broadcast %14 : vector<1x128xi1> to vector<16x128xi1>
    %16 = vector.broadcast %cst_5 : f32 to vector<16x128xf32>
    %17 = arith.select %15, %3, %16 : vector<16x128xi1>, vector<16x128xf32>
    %18 = vector.shape_cast %11 : vector<1x128xi1> to vector<1x128xi1>
    %19 = vector.broadcast %18 : vector<1x128xi1> to vector<16x128xi1>
    %20 = vector.shape_cast %9 : vector<16x1xf32> to vector<16x1xf32>
    %21 = vector.broadcast %20 : vector<16x1xf32> to vector<16x128xf32>
    %22 = arith.select %19, %21, %17 : vector<16x128xi1>, vector<16x128xf32>
    %c0_6 = arith.constant 0 : index
    %c0_7 = arith.constant 0 : index
    %c0_8 = arith.constant 0 : index
    %23 = vector.load %arg6[%c0_6, %c0_7, %c0_8] : memref<1x16x16xbf16, #tpu.memory_space<vmem>>, vector<1x16x16xbf16>
    %24 = vector.shape_cast %23 : vector<1x16x16xbf16> to vector<16x16xbf16>
    %25 = arith.truncf %22 : vector<16x128xf32> to vector<16x128xbf16>
    %cst_9 = arith.constant dense<0.000000e+00> : vector<16x128xf32>
    %26 = tpu.matmul %24, %25, %cst_9 {dimension_numbers = #tpu.dot_dimension_numbers<[1], [0], [0], [1], [0, 0, 1, 1], [], []>} : vector<16x16xbf16>, vector<16x128xbf16>, vector<16x128xf32> -> vector<16x128xf32>
    %c0_10 = arith.constant 0 : index
    %c0_11 = arith.constant 0 : index
    %c0_12 = arith.constant 0 : index
    %27 = vector.load %arg8[%c0_10, %c0_11, %c0_12] : memref<1x16x1xf32, #tpu.memory_space<vmem>>, vector<1x16x1xf32>
    %28 = vector.shape_cast %27 : vector<1x16x1xf32> to vector<16x1xf32>
    %c32_i32_13 = arith.constant 32 : i32
    %29 = vector.broadcast %c32_i32_13 : i32 to vector<1x128xi32>
    %30 = arith.cmpi eq, %4, %29 : vector<1x128xi32>
    %cst_14 = arith.constant 0.000000e+00 : f32
    %31 = vector.shape_cast %30 : vector<1x128xi1> to vector<1x128xi1>
    %32 = vector.broadcast %31 : vector<1x128xi1> to vector<16x128xi1>
    %33 = vector.broadcast %cst_14 : f32 to vector<16x128xf32>
    %34 = arith.select %32, %26, %33 : vector<16x128xi1>, vector<16x128xf32>
    %cst_15 = arith.constant dense<0.000000e+00> : vector<16xf32>
    %35 = vector.multi_reduction <add>, %34, %cst_15 [1] : vector<16x128xf32> to vector<16xf32>
    %36 = vector.shape_cast %35 : vector<16xf32> to vector<16x1xf32>
    %37 = arith.addf %28, %36 : vector<16x1xf32>
    %cst_16 = arith.constant dense<0xFF800000> : vector<1xf32>
    %38 = vector.multi_reduction <maximumf>, %37, %cst_16 [0] : vector<16x1xf32> to vector<1xf32>
    %39 = vector.shape_cast %38 : vector<1xf32> to vector<1x1xf32>
    %40 = vector.broadcast %39 : vector<1x1xf32> to vector<16x1xf32>
    %41 = arith.subf %37, %40 : vector<16x1xf32>
    %42 = math.exp %41 : vector<16x1xf32>
    %43 = vector.broadcast %42 : vector<16x1xf32> to vector<16x128xf32>
    %44 = arith.mulf %43, %26 : vector<16x128xf32>
    %c33_i32 = arith.constant 33 : i32
    %45 = vector.broadcast %c33_i32 : i32 to vector<1x128xi32>
    %46 = arith.cmpi eq, %4, %45 : vector<1x128xi32>
    %cst_17 = arith.constant 0.000000e+00 : f32
    %47 = vector.shape_cast %46 : vector<1x128xi1> to vector<1x128xi1>
    %48 = vector.broadcast %47 : vector<1x128xi1> to vector<16x128xi1>
    %49 = vector.shape_cast %42 : vector<16x1xf32> to vector<16x1xf32>
    %50 = vector.broadcast %49 : vector<16x1xf32> to vector<16x128xf32>
    %51 = vector.broadcast %cst_17 : f32 to vector<16x128xf32>
    %52 = arith.select %48, %50, %51 : vector<16x128xi1>, vector<16x128xf32>
    %53 = arith.addf %44, %52 : vector<16x128xf32>
    %c34_i32 = arith.constant 34 : i32
    %54 = vector.broadcast %c34_i32 : i32 to vector<1x128xi32>
    %55 = arith.cmpi eq, %4, %54 : vector<1x128xi32>
    %cst_18 = arith.constant 1.000000e+00 : f32
    %cst_19 = arith.constant 0.000000e+00 : f32
    %56 = vector.broadcast %cst_18 : f32 to vector<1x128xf32>
    %57 = vector.broadcast %cst_19 : f32 to vector<1x128xf32>
    %58 = arith.select %55, %56, %57 : vector<1x128xi1>, vector<1x128xf32>
    %59 = vector.broadcast %58 : vector<1x128xf32> to vector<16x128xf32>
    %60 = arith.addf %53, %59 : vector<16x128xf32>
    %c0_20 = arith.constant 0 : index
    %c0_21 = arith.constant 0 : index
    %c0_22 = arith.constant 0 : index
    %61 = vector.load %arg7[%c0_20, %c0_21, %c0_22] : memref<1x16x16xf32, #tpu.memory_space<vmem>>, vector<1x16x16xf32>
    %62 = vector.shape_cast %61 : vector<1x16x16xf32> to vector<16x16xf32>
    %cst_23 = arith.constant dense<0.000000e+00> : vector<16x128xf32>
    %63 = tpu.matmul %62, %60, %cst_23 {dimension_numbers = #tpu.dot_dimension_numbers<[1], [0], [0], [1], [0, 0, 1, 1], [], []>} : vector<16x16xf32>, vector<16x128xf32>, vector<16x128xf32> -> vector<16x128xf32>
    %c33_i32_24 = arith.constant 33 : i32
    %64 = vector.broadcast %c33_i32_24 : i32 to vector<1x128xi32>
    %65 = arith.cmpi eq, %4, %64 : vector<1x128xi32>
    %cst_25 = arith.constant 0.000000e+00 : f32
    %66 = vector.shape_cast %65 : vector<1x128xi1> to vector<1x128xi1>
    %67 = vector.broadcast %66 : vector<1x128xi1> to vector<16x128xi1>
    %68 = vector.broadcast %cst_25 : f32 to vector<16x128xf32>
    %69 = arith.select %67, %63, %68 : vector<16x128xi1>, vector<16x128xf32>
    %cst_26 = arith.constant dense<0.000000e+00> : vector<16xf32>
    %70 = vector.multi_reduction <add>, %69, %cst_26 [1] : vector<16x128xf32> to vector<16xf32>
    %71 = vector.shape_cast %70 : vector<16xf32> to vector<16x1xf32>
    %c34_i32_27 = arith.constant 34 : i32
    %72 = vector.broadcast %c34_i32_27 : i32 to vector<1x128xi32>
    %73 = arith.cmpi eq, %4, %72 : vector<1x128xi32>
    %cst_28 = arith.constant 0.000000e+00 : f32
    %74 = vector.shape_cast %73 : vector<1x128xi1> to vector<1x128xi1>
    %75 = vector.broadcast %74 : vector<1x128xi1> to vector<16x128xi1>
    %76 = vector.broadcast %cst_28 : f32 to vector<16x128xf32>
    %77 = arith.select %75, %63, %76 : vector<16x128xi1>, vector<16x128xf32>
    %cst_29 = arith.constant dense<0.000000e+00> : vector<16xf32>
    %78 = vector.multi_reduction <add>, %77, %cst_29 [1] : vector<16x128xf32> to vector<16xf32>
    %79 = vector.shape_cast %78 : vector<16xf32> to vector<16x1xf32>
    %cst_30 = arith.constant 1.000000e-16 : f32
    %80 = vector.broadcast %cst_30 : f32 to vector<16x1xf32>
    %81 = arith.addf %71, %80 : vector<16x1xf32>
    %82 = vector.broadcast %81 : vector<16x1xf32> to vector<16x128xf32>
    %83 = arith.divf %63, %82 : vector<16x128xf32>
    %c0_31 = arith.constant 0 : index
    %c0_32 = arith.constant 0 : index
    %84 = vector.load %arg2[%c0_31, %c0_32] : memref<16x384xf32, #tpu.memory_space<vmem>>, vector<16x384xf32>
    %85 = arith.truncf %83 : vector<16x128xf32> to vector<16x128xbf16>
    %c0_33 = arith.constant 0 : index
    %c0_34 = arith.constant 0 : index
    %86 = vector.load %arg4[%c0_33, %c0_34] : memref<128x384xbf16, #tpu.memory_space<vmem>>, vector<128x384xbf16>
    %cst_35 = arith.constant dense<0.000000e+00> : vector<16x384xf32>
    %87 = tpu.matmul %85, %86, %cst_35 {dimension_numbers = #tpu.dot_dimension_numbers<[1], [0], [0], [1], [0, 0, 1, 1], [], []>} : vector<16x128xbf16>, vector<128x384xbf16>, vector<16x384xf32> -> vector<16x384xf32>
    %c0_36 = arith.constant 0 : index
    %c0_37 = arith.constant 0 : index
    %88 = vector.load %arg5[%c0_36, %c0_37] : memref<1x384xf32, #tpu.memory_space<vmem>>, vector<1x384xf32>
    %89 = vector.broadcast %88 : vector<1x384xf32> to vector<16x384xf32>
    %90 = arith.addf %87, %89 : vector<16x384xf32>
    %91 = vector.extract_strided_slice %84 {offsets = [0, 0], sizes = [16, 128], strides = [1, 1]} : vector<16x384xf32> to vector<16x128xf32>
    %92 = vector.extract_strided_slice %90 {offsets = [0, 0], sizes = [16, 128], strides = [1, 1]} : vector<16x384xf32> to vector<16x128xf32>
    %93 = arith.addf %91, %92 : vector<16x128xf32>
    %94 = arith.negf %93 : vector<16x128xf32>
    %95 = math.exp %94 : vector<16x128xf32>
    %cst_38 = arith.constant 1.000000e+00 : f32
    %96 = vector.broadcast %cst_38 : f32 to vector<16x128xf32>
    %97 = arith.addf %96, %95 : vector<16x128xf32>
    %98 = arith.divf %96, %97 : vector<16x128xf32>
    %99 = vector.extract_strided_slice %84 {offsets = [0, 128], sizes = [16, 128], strides = [1, 1]} : vector<16x384xf32> to vector<16x128xf32>
    %100 = vector.extract_strided_slice %90 {offsets = [0, 128], sizes = [16, 128], strides = [1, 1]} : vector<16x384xf32> to vector<16x128xf32>
    %101 = arith.addf %99, %100 : vector<16x128xf32>
    %102 = arith.negf %101 : vector<16x128xf32>
    %103 = math.exp %102 : vector<16x128xf32>
    %cst_39 = arith.constant 1.000000e+00 : f32
    %104 = vector.broadcast %cst_39 : f32 to vector<16x128xf32>
    %105 = arith.addf %104, %103 : vector<16x128xf32>
    %106 = arith.divf %104, %105 : vector<16x128xf32>
    %107 = vector.extract_strided_slice %84 {offsets = [0, 256], sizes = [16, 128], strides = [1, 1]} : vector<16x384xf32> to vector<16x128xf32>
    %108 = vector.extract_strided_slice %90 {offsets = [0, 256], sizes = [16, 128], strides = [1, 1]} : vector<16x384xf32> to vector<16x128xf32>
    %109 = arith.mulf %98, %108 : vector<16x128xf32>
    %110 = arith.addf %107, %109 : vector<16x128xf32>
    %111 = math.tanh %110 : vector<16x128xf32>
    %cst_40 = arith.constant 1.000000e+00 : f32
    %112 = vector.broadcast %cst_40 : f32 to vector<16x128xf32>
    %113 = arith.subf %112, %106 : vector<16x128xf32>
    %114 = arith.mulf %113, %111 : vector<16x128xf32>
    %115 = arith.mulf %106, %83 : vector<16x128xf32>
    %116 = arith.addf %114, %115 : vector<16x128xf32>
    %cst_41 = arith.constant 5.000000e-01 : f32
    %117 = vector.broadcast %cst_41 : f32 to vector<16x1xf32>
    %118 = arith.cmpf ogt, %79, %117 : vector<16x1xf32>
    %119 = vector.shape_cast %118 : vector<16x1xi1> to vector<16x1xi1>
    %120 = vector.broadcast %119 : vector<16x1xi1> to vector<16x128xi1>
    %121 = arith.select %120, %116, %3 : vector<16x128xi1>, vector<16x128xf32>
    %c0_42 = arith.constant 0 : index
    %c0_43 = arith.constant 0 : index
    %122 = vector.load %arg9[%c0_42, %c0_43] : memref<16x128xf32, #tpu.memory_space<vmem>>, vector<16x128xf32>
    tpu.vector_store %arg9[%c0_42, %c0_43], %121 {strides = array<i32>} : memref<16x128xf32, #tpu.memory_space<vmem>>, vector<16x128xf32>,
    return
  }
  func.func @transform_0(%arg0: i32) -> (i32, i32) {
    %c0_i32 = arith.constant 0 : i32
    %c0_i32_0 = arith.constant 0 : i32
    %c0_i32_1 = arith.constant 0 : i32
    return %c0_i32, %c0_i32_0 : i32, i32
  }
  func.func @transform_1(%arg0: i32) -> (i32, i32) {
    %c0_i32 = arith.constant 0 : i32
    %c0_i32_0 = arith.constant 0 : i32
    %c0_i32_1 = arith.constant 0 : i32
    return %c0_i32, %c0_i32_0 : i32, i32
  }
  func.func @transform_2(%arg0: i32) -> (i32, i32) {
    %c0_i32 = arith.constant 0 : i32
    %c0_i32_0 = arith.constant 0 : i32
    %c0_i32_1 = arith.constant 0 : i32
    return %c0_i32, %c0_i32_0 : i32, i32
  }
  func.func @transform_3(%arg0: i32) -> (i32, i32) {
    %c0_i32 = arith.constant 0 : i32
    %c0_i32_0 = arith.constant 0 : i32
    %c0_i32_1 = arith.constant 0 : i32
    return %c0_i32, %c0_i32_0 : i32, i32
  }
  func.func @transform_4(%arg0: i32) -> (i32, i32) {
    %c0_i32 = arith.constant 0 : i32
    %c0_i32_0 = arith.constant 0 : i32
    %c0_i32_1 = arith.constant 0 : i32
    return %c0_i32, %c0_i32_0 : i32, i32
  }
  func.func @transform_5(%arg0: i32) -> (i32, i32, i32) {
    %c0_i32 = arith.constant 0 : i32
    %c0_i32_0 = arith.constant 0 : i32
    %c0_i32_1 = arith.constant 0 : i32
    return %arg0, %c0_i32, %c0_i32_0 : i32, i32, i32
  }
  func.func @transform_6(%arg0: i32) -> (i32, i32, i32) {
    %c0_i32 = arith.constant 0 : i32
    %c0_i32_0 = arith.constant 0 : i32
    %c0_i32_1 = arith.constant 0 : i32
    return %arg0, %c0_i32, %c0_i32_0 : i32, i32, i32
  }
  func.func @transform_7(%arg0: i32) -> (i32, i32, i32) {
    %c0_i32 = arith.constant 0 : i32
    %c0_i32_0 = arith.constant 0 : i32
    %c0_i32_1 = arith.constant 0 : i32
    return %arg0, %c0_i32, %c0_i32_0 : i32, i32, i32
  }
  func.func @transform_8(%arg0: i32) -> (i32, i32) {
    %c0_i32 = arith.constant 0 : i32
    %c0_i32_0 = arith.constant 0 : i32
    %c0_i32_1 = arith.constant 0 : i32
    return %c0_i32, %c0_i32_0 : i32, i32
  }
}

</mosaic_0001>

<llo_original>
// kernel: tpu_custom_call.1
$region0: #{tpu_custom_call.1}
  #allocation0 [shape = 'u32[]', space=smem, size = 0x4, offset = 0x4, fixed_abs, tag = 'smem constant byte address 0x4 - core index']
  #allocation1 [shape = 'u32[72,128]{1,0:T(1,128)}', space=vmem, size = 0x9000, scoped, tag = 'internal scratch']
  %s0 = inlined_call_operand.hbm [shape: f32[16,128], index: 0, kind: input, shape index: {}]
  %s1 = inlined_call_operand.vmem [shape: f32[16,384], index: 1, kind: input, shape index: {}]
  %s2 = inlined_call_operand.vmem [shape: f32[1,128], index: 2, kind: input, shape index: {}]
  %s3 = inlined_call_operand.hbm [shape: bf16[128,384], index: 3, kind: input, shape index: {}]
  %s4 = inlined_call_operand.vmem [shape: f32[1,384], index: 4, kind: input, shape index: {}]
  %s5 = inlined_call_operand.hbm [shape: bf16[3,16,16], index: 5, kind: input, shape index: {}]
  %s6 = inlined_call_operand.hbm [shape: f32[3,16,16], index: 6, kind: input, shape index: {}]
  %s7 = inlined_call_operand.vmem [shape: f32[3,16,1], index: 7, kind: input, shape index: {}]
  %s8 = inlined_call_operand.hbm [shape: f32[16,128], index: 8, kind: output, shape index: {}]
  %s9 = sld [smem:[#allocation0]]
  $region85: #{tpu_custom_call.1} parent=0
    _
  %s11 = ssub.s32 1, %s9
  %s12 = scalar_select 0, %s11, %s9
  $region1: #{tpu_custom_call.1} parent=0
    #allocation2 [shape = 'u8[8192]{0}', space=vmem, size = 0x2000, scoped, tag = 'input window, operand 0, single buffered']
    #allocation3 [shape = 's32[2]{0}', space=sflag, size = 0x8, scoped, tag = 'scoped memory for tpu_custom_call.1']
    #allocation4 [shape = 's32[2]{0}', space=sflag, size = 0x8, scoped, tag = 'scoped memory for tpu_custom_call.1']
    #allocation5 [shape = 'u8[98304]{0}', space=vmem, size = 0x18000, scoped, tag = 'input window, operand 3, single buffered']
    #allocation6 [shape = 's32[1]{0}', space=sflag, size = 0x4, scoped, tag = 'scoped memory for tpu_custom_call.1']
    #allocation7 [shape = 'u8[8192]{0}', space=vmem, size = 0x2000, scoped, tag = 'input window, operand 5']
    #allocation8 [shape = 'u8[16384]{0}', space=vmem, size = 0x4000, scoped, tag = 'input window, operand 6']
    #allocation9 [shape = 'u8[8192]{0}', space=vmem, size = 0x2000, scoped, tag = 'output window, operand 0, single buffered']
    %13 = vsyncpa [#allocation3], 0
    %14 = vsyncpa [#allocation6], 0
    %15 = vsyncpa [#allocation4], 0
    loop: start=0, step=1, limit=5
    $region2: #{tpu_custom_call.1} parent=1 // loop_pre_header
      _
    $region3: #{tpu_custom_call.1} parent=1 // loop_header
      %s17 = sphi 0, %s21
      %p18 = scmp.ge.s32.totalorder %s17, 5
      %s25 = sphi 0, %s25
      %s27 = sphi 0, %s25
      %s28 = sphi 0, %s27
      %s42 = sphi 0, %s28
      %s46 = sphi 0, %s46
      %s48 = sphi 0, %s46
      %s49 = sphi 0, %s48
      %s63 = sphi 0, %s49
      %s67 = sphi 0, %s67
      %s69 = sphi 0, %s67
      %s70 = sphi 0, %s69
      %s84 = sphi 0, %s70
      %s88 = sphi 0, %s88
      %s90 = sphi 0, %s88
      %s91 = sphi 0, %s90
      %s105 = sphi 0, %s91
      %s109 = sphi 0, %s109
      %s111 = sphi 0, %s109
      %s112 = sphi 0, %s111
      %s126 = sphi 0, %s112
      %s132 = sphi 0, %s134
      %s135 = sphi 0, %s132
      %s136 = sphi 0, %s135
      %s152 = sphi 0, %s136
      %s158 = sphi 0, %s160
      %s161 = sphi 0, %s158
      %s162 = sphi 0, %s161
      %s178 = sphi 0, %s162
      %s184 = sphi 0, %s186
      %s187 = sphi 0, %s184
      %s188 = sphi 0, %s187
      %s204 = sphi 0, %s188
      %s208 = sphi 0, %s208
      %s210 = sphi 0, %s208
      %s211 = sphi 0, %s210
      %s225 = sphi 0, %s211
    $region4: #{tpu_custom_call.1} parent=1 // loop_header_branch
      %20 = sbr.rel (%p18) target = $region8
    $region5: #{tpu_custom_call.1} parent=1 // loop_body
      %s22 = ssub.s32 %s17, 1
      %s23 = ssub.s32 %s17, 2
      %s24 = sadd.s32 %s17, 1
      %s26 = sadd.s32 %s25, 1
      %p29 = scmp.eq.s32.totalorder %s17, 2
      %p30 = scmp.ne.s32.totalorder %s25, %s27
      %p31 = scmp.eq.s32.totalorder %s17, 0
      %p32 = por %p30, %p31
      %p33 = scmp.ne.s32.totalorder %s25, %s27
      %p34 = scmp.eq.s32.totalorder %s22, 2
      %p35 = por %p33, %p34
      %p36 = scmp.ne.s32.totalorder %s27, %s28
      %p37 = scmp.eq.s32.totalorder %s22, 0
      %p38 = por %p36, %p37
      %p39 = scmp.ne.s32.totalorder %s27, %s28
      %p40 = scmp.eq.s32.totalorder %s23, 2
      %p41 = por %p39, %p40
      %p43 = scmp.ne.s32.totalorder %s28, %s42
      %p44 = scmp.eq.s32.totalorder %s23, 0
      %p45 = por %p43, %p44
      %s47 = sadd.s32 %s46, 1
      %p50 = scmp.eq.s32.totalorder %s17, 2
      %p51 = scmp.ne.s32.totalorder %s46, %s48
      %p52 = scmp.eq.s32.totalorder %s17, 0
      %p53 = por %p51, %p52
      %p54 = scmp.ne.s32.totalorder %s46, %s48
      %p55 = scmp.eq.s32.totalorder %s22, 2
      %p56 = por %p54, %p55
      %p57 = scmp.ne.s32.totalorder %s48, %s49
      %p58 = scmp.eq.s32.totalorder %s22, 0
      %p59 = por %p57, %p58
      %p60 = scmp.ne.s32.totalorder %s48, %s49
      %p61 = scmp.eq.s32.totalorder %s23, 2
      %p62 = por %p60, %p61
      %p64 = scmp.ne.s32.totalorder %s49, %s63
      %p65 = scmp.eq.s32.totalorder %s23, 0
      %p66 = por %p64, %p65
      %s68 = sadd.s32 %s67, 1
      %p71 = scmp.eq.s32.totalorder %s17, 2
      %p72 = scmp.ne.s32.totalorder %s67, %s69
      %p73 = scmp.eq.s32.totalorder %s17, 0
      %p74 = por %p72, %p73
      %p75 = scmp.ne.s32.totalorder %s67, %s69
      %p76 = scmp.eq.s32.totalorder %s22, 2
      %p77 = por %p75, %p76
      %p78 = scmp.ne.s32.totalorder %s69, %s70
      %p79 = scmp.eq.s32.totalorder %s22, 0
      %p80 = por %p78, %p79
      %p81 = scmp.ne.s32.totalorder %s69, %s70
      %p82 = scmp.eq.s32.totalorder %s23, 2
      %p83 = por %p81, %p82
      %p85 = scmp.ne.s32.totalorder %s70, %s84
      %p86 = scmp.eq.s32.totalorder %s23, 0
      %p87 = por %p85, %p86
      %s89 = sadd.s32 %s88, 1
      %p92 = scmp.eq.s32.totalorder %s17, 2
      %p93 = scmp.ne.s32.totalorder %s88, %s90
      %p94 = scmp.eq.s32.totalorder %s17, 0
      %p95 = por %p93, %p94
      %p96 = scmp.ne.s32.totalorder %s88, %s90
      %p97 = scmp.eq.s32.totalorder %s22, 2
      %p98 = por %p96, %p97
      %p99 = scmp.ne.s32.totalorder %s90, %s91
      %p100 = scmp.eq.s32.totalorder %s22, 0
      %p101 = por %p99, %p100
      %p102 = scmp.ne.s32.totalorder %s90, %s91
      %p103 = scmp.eq.s32.totalorder %s23, 2
      %p104 = por %p102, %p103
      %p106 = scmp.ne.s32.totalorder %s91, %s105
      %p107 = scmp.eq.s32.totalorder %s23, 0
      %p108 = por %p106, %p107
      %s110 = sadd.s32 %s109, 1
      %p113 = scmp.eq.s32.totalorder %s17, 2
      %p114 = scmp.ne.s32.totalorder %s109, %s111
      %p115 = scmp.eq.s32.totalorder %s17, 0
      %p116 = por %p114, %p115
      %p117 = scmp.ne.s32.totalorder %s109, %s111
      %p118 = scmp.eq.s32.totalorder %s22, 2
      %p119 = por %p117, %p118
      %p120 = scmp.ne.s32.totalorder %s111, %s112
      %p121 = scmp.eq.s32.totalorder %s22, 0
      %p122 = por %p120, %p121
      %p123 = scmp.ne.s32.totalorder %s111, %s112
      %p124 = scmp.eq.s32.totalorder %s23, 2
      %p125 = por %p123, %p124
      %p127 = scmp.ne.s32.totalorder %s112, %s126
      %p128 = scmp.eq.s32.totalorder %s23, 0
      %p129 = por %p127, %p128
      %s130 = ssub.s32 %s17, %s24
      %p131 = scmp.eq.s32.totalorder %s130, 0
      %s133 = sadd.s32 %s132, 1
      %s134 = scalar_select %p131, %s132, %s133
      %p137 = pneg %p131
      %p138 = scmp.eq.s32.totalorder %s17, 2
      %p139 = por %p137, %p138
      %p140 = scmp.ne.s32.totalorder %s132, %s135
      %p141 = scmp.eq.s32.totalorder %s17, 0
      %p142 = por %p140, %p141
      %p143 = scmp.ne.s32.totalorder %s132, %s135
      %p144 = scmp.eq.s32.totalorder %s22, 2
      %p145 = por %p143, %p144
      %p146 = scmp.ne.s32.totalorder %s135, %s136
      %p147 = scmp.eq.s32.totalorder %s22, 0
      %p148 = por %p146, %p147
      %p149 = scmp.ne.s32.totalorder %s135, %s136
      %p150 = scmp.eq.s32.totalorder %s23, 2
      %p151 = por %p149, %p150
      %p153 = scmp.ne.s32.totalorder %s136, %s152
      %p154 = scmp.eq.s32.totalorder %s23, 0
      %p155 = por %p153, %p154
      %s156 = ssub.s32 %s17, %s24
      %p157 = scmp.eq.s32.totalorder %s156, 0
      %s159 = sadd.s32 %s158, 1
      %s160 = scalar_select %p157, %s158, %s159
      %p163 = pneg %p157
      %p164 = scmp.eq.s32.totalorder %s17, 2
      %p165 = por %p163, %p164
      %p166 = scmp.ne.s32.totalorder %s158, %s161
      %p167 = scmp.eq.s32.totalorder %s17, 0
      %p168 = por %p166, %p167
      %p169 = scmp.ne.s32.totalorder %s158, %s161
      %p170 = scmp.eq.s32.totalorder %s22, 2
      %p171 = por %p169, %p170
      %p172 = scmp.ne.s32.totalorder %s161, %s162
      %p173 = scmp.eq.s32.totalorder %s22, 0
      %p174 = por %p172, %p173
      %p175 = scmp.ne.s32.totalorder %s161, %s162
      %p176 = scmp.eq.s32.totalorder %s23, 2
      %p177 = por %p175, %p176
      %p179 = scmp.ne.s32.totalorder %s162, %s178
      %p180 = scmp.eq.s32.totalorder %s23, 0
      %p181 = por %p179, %p180
      %s182 = ssub.s32 %s17, %s24
      %p183 = scmp.eq.s32.totalorder %s182, 0
      %s185 = sadd.s32 %s184, 1
      %s186 = scalar_select %p183, %s184, %s185
      %p189 = pneg %p183
      %p190 = scmp.eq.s32.totalorder %s17, 2
      %p191 = por %p189, %p190
      %p192 = scmp.ne.s32.totalorder %s184, %s187
      %p193 = scmp.eq.s32.totalorder %s17, 0
      %p194 = por %p192, %p193
      %p195 = scmp.ne.s32.totalorder %s184, %s187
      %p196 = scmp.eq.s32.totalorder %s22, 2
      %p197 = por %p195, %p196
      %p198 = scmp.ne.s32.totalorder %s187, %s188
      %p199 = scmp.eq.s32.totalorder %s22, 0
      %p200 = por %p198, %p199
      %p201 = scmp.ne.s32.totalorder %s187, %s188
      %p202 = scmp.eq.s32.totalorder %s23, 2
      %p203 = por %p201, %p202
      %p205 = scmp.ne.s32.totalorder %s188, %s204
      %p206 = scmp.eq.s32.totalorder %s23, 0
      %p207 = por %p205, %p206
      %s209 = sadd.s32 %s208, 1
      %p212 = scmp.eq.s32.totalorder %s17, 2
      %p213 = scmp.ne.s32.totalorder %s208, %s210
      %p214 = scmp.eq.s32.totalorder %s17, 0
      %p215 = por %p213, %p214
      %p216 = scmp.ne.s32.totalorder %s208, %s210
      %p217 = scmp.eq.s32.totalorder %s22, 2
      %p218 = por %p216, %p217
      %p219 = scmp.ne.s32.totalorder %s210, %s211
      %p220 = scmp.eq.s32.totalorder %s22, 0
      %p221 = por %p219, %p220
      %p222 = scmp.ne.s32.totalorder %s210, %s211
      %p223 = scmp.eq.s32.totalorder %s23, 2
      %p224 = por %p222, %p223
      %p226 = scmp.ne.s32.totalorder %s211, %s225
      %p227 = scmp.eq.s32.totalorder %s23, 0
      %p228 = por %p226, %p227
      %p229 = scmp.le.s32.totalorder 1, %s17
      %p230 = scmp.lt.s32.totalorder %s17, 4
      %p231 = pnand %p229, %p230
      %p232 = pneg %p231
      // Predicated region
      $region9: #{tpu_custom_call.1} parent=5 // pred_check
        _
      $region10: #{tpu_custom_call.1} parent=5 // pred_check_branch
        %234 = sbr.rel (%p231) target = $region12
      $region11: #{tpu_custom_call.1} parent=5 // pred_region
        %s235 = ssub.s32 %s17, 1
        // Predicated region
        $region13: #{tpu_custom_call.1} parent=11 // pred_check
          %p236 = pneg %p38
        $region14: #{tpu_custom_call.1} parent=11 // pred_check_branch
          %238 = sbr.rel (%p236) target = $region16
        $region15: #{tpu_custom_call.1} parent=11 // pred_region
          %240 = vsyncadd [#allocation3], 0
          %s241 = sshll.u32 %s0, 4
          %s242 = int_to_ptr.hbm [resolvable:$true] %s241
          %s243 = sshll.u32 [#allocation2], 4
          %s244 = int_to_ptr.vmem [resolvable:$true] %s243
          %249 = dma.hbm_to_vmem [thread:$0]  %s242, 256, %s244, [#allocation3], 128, 128, 8
        $region16: #{tpu_custom_call.1} parent=11 // pred_fallthru
          _
        // Predicated region
        $region17: #{tpu_custom_call.1} parent=11 // pred_check
          %p250 = pneg %p59
        $region18: #{tpu_custom_call.1} parent=11 // pred_check_branch
          %252 = sbr.rel (%p250) target = $region20
        $region19: #{tpu_custom_call.1} parent=11 // pred_region
          _
        $region20: #{tpu_custom_call.1} parent=11 // pred_fallthru
          _
        // Predicated region
        $region21: #{tpu_custom_call.1} parent=11 // pred_check
          %p253 = pneg %p80
        $region22: #{tpu_custom_call.1} parent=11 // pred_check_branch
          %255 = sbr.rel (%p253) target = $region24
        $region23: #{tpu_custom_call.1} parent=11 // pred_region
          _
        $region24: #{tpu_custom_call.1} parent=11 // pred_fallthru
          _
        // Predicated region
        $region25: #{tpu_custom_call.1} parent=11 // pred_check
          %p256 = pneg %p101
        $region26: #{tpu_custom_call.1} parent=11 // pred_check_branch
          %258 = sbr.rel (%p256) target = $region28
        $region27: #{tpu_custom_call.1} parent=11 // pred_region
          %260 = vsyncadd [#allocation6], 0
          %s261 = sshll.u32 %s3, 4
          %s262 = int_to_ptr.hbm [resolvable:$true] %s261
          %s263 = sshll.u32 [#allocation5], 4
          %s264 = int_to_ptr.vmem [resolvable:$true] %s263
          %269 = dma.hbm_to_vmem [thread:$0]  %s262, 3072, %s264, [#allocation6], 192, 192, 12
        $region28: #{tpu_custom_call.1} parent=11 // pred_fallthru
          _
        // Predicated region
        $region29: #{tpu_custom_call.1} parent=11 // pred_check
          %p270 = pneg %p122
        $region30: #{tpu_custom_call.1} parent=11 // pred_check_branch
          %272 = sbr.rel (%p270) target = $region32
        $region31: #{tpu_custom_call.1} parent=11 // pred_region
          _
        $region32: #{tpu_custom_call.1} parent=11 // pred_fallthru
          _
      $region12: #{tpu_custom_call.1} parent=5 // pred_fallthru
        _
      %p273 = scmp.lt.s32.totalorder %s17, 3
      // Predicated region
      $region33: #{tpu_custom_call.1} parent=5 // pred_check
        %p274 = pneg %p273
      $region34: #{tpu_custom_call.1} parent=5 // pred_check_branch
        %276 = sbr.rel (%p274) target = $region36
      $region35: #{tpu_custom_call.1} parent=5 // pred_region
        // Predicated region
        $region37: #{tpu_custom_call.1} parent=35 // pred_check
          %p277 = pneg %p142
        $region38: #{tpu_custom_call.1} parent=35 // pred_check_branch
          %279 = sbr.rel (%p277) target = $region40
        $region39: #{tpu_custom_call.1} parent=35 // pred_region
          %s280 = sand.u32 %s17, 1
          %s281 = scalar_lea.sflag [#allocation3], %s280
          %s282 = sand.u32 %s132, 1
          %s283 = smul.addr %s282, 8
          %s284 = scalar_lea.vmem [#allocation7], %s283
          %286 = vsyncadd %s281, 0
          %s287 = smul.addr %s17, 2
          %s288 = smul.addr %s287, 4
          %s289 = scalar_lea.hbm %s5, %s288
          %s290 = sshll.u32 %s289, 4
          %s291 = int_to_ptr.hbm [resolvable:$true] %s290
          %s292 = sshll.u32 %s284, 4
          %s293 = int_to_ptr.vmem [resolvable:$true] %s292
          %298 = dma.hbm_to_vmem [thread:$0]  %s291, 128, %s293, %s281, 64, 64, 4
        $region40: #{tpu_custom_call.1} parent=35 // pred_fallthru
          _
        // Predicated region
        $region41: #{tpu_custom_call.1} parent=35 // pred_check
          %p299 = pneg %p168
        $region42: #{tpu_custom_call.1} parent=35 // pred_check_branch
          %301 = sbr.rel (%p299) target = $region44
        $region43: #{tpu_custom_call.1} parent=35 // pred_region
          %s302 = sand.u32 %s17, 1
          %s303 = scalar_lea.sflag [#allocation3], %s302
          %s304 = sand.u32 %s158, 1
          %s305 = smul.addr %s304, 16
          %s306 = scalar_lea.vmem [#allocation8], %s305
          %308 = vsyncadd %s303, 0
          %s309 = smul.addr %s17, 2
          %s310 = smul.addr %s309, 8
          %s311 = scalar_lea.hbm %s6, %s310
          %s312 = sshll.u32 %s311, 4
          %s313 = int_to_ptr.hbm [resolvable:$true] %s312
          %s314 = sshll.u32 %s306, 4
          %s315 = int_to_ptr.vmem [resolvable:$true] %s314
          %320 = dma.hbm_to_vmem [thread:$0]  %s313, 256, %s315, %s303, 128, 128, 8
        $region44: #{tpu_custom_call.1} parent=35 // pred_fallthru
          _
        // Predicated region
        $region45: #{tpu_custom_call.1} parent=35 // pred_check
          %p321 = pneg %p194
        $region46: #{tpu_custom_call.1} parent=35 // pred_check_branch
          %323 = sbr.rel (%p321) target = $region48
        $region47: #{tpu_custom_call.1} parent=35 // pred_region
          %p324 = scmp.lt.s32.totalorder %s17, 2
          %s325 = scalar_select %p324, %s17, 2
          %s326 = smul.addr %s325, 2
          %s327 = smul.addr %s326, 8
          %s328 = scalar_lea.vmem %s7, %s327
        $region48: #{tpu_custom_call.1} parent=35 // pred_fallthru
          _
      $region36: #{tpu_custom_call.1} parent=5 // pred_fallthru
        _
      %p329 = scmp.le.s32.totalorder 1, %s17
      %p330 = scmp.lt.s32.totalorder %s17, 4
      %p331 = pnand %p329, %p330
      %p332 = pneg %p331
      // Predicated region
      $region49: #{tpu_custom_call.1} parent=5 // pred_check
        _
      $region50: #{tpu_custom_call.1} parent=5 // pred_check_branch
        %334 = sbr.rel (%p331) target = $region52
      $region51: #{tpu_custom_call.1} parent=5 // pred_region
        %s335 = ssub.s32 %s17, 1
        // Predicated region
        $region53: #{tpu_custom_call.1} parent=51 // pred_check
          %p336 = pneg %p38
        $region54: #{tpu_custom_call.1} parent=51 // pred_check_branch
          %338 = sbr.rel (%p336) target = $region56
        $region55: #{tpu_custom_call.1} parent=51 // pred_region
          %340 = dma.done [#allocation3], 256
        $region56: #{tpu_custom_call.1} parent=51 // pred_fallthru
          _
        // Predicated region
        $region57: #{tpu_custom_call.1} parent=51 // pred_check
          %p341 = pneg %p101
        $region58: #{tpu_custom_call.1} parent=51 // pred_check_branch
          %343 = sbr.rel (%p341) target = $region60
        $region59: #{tpu_custom_call.1} parent=51 // pred_region
          %345 = dma.done [#allocation6], 3072
        $region60: #{tpu_custom_call.1} parent=51 // pred_fallthru
          _
        %s346 = sand.u32 %s22, 1
        %s347 = scalar_lea.sflag [#allocation3], %s346
        %s348 = sand.u32 %s135, 1
        %s349 = smul.addr %s348, 8
        %s350 = scalar_lea.vmem [#allocation7], %s349
        // Predicated region
        $region61: #{tpu_custom_call.1} parent=51 // pred_check
          %p351 = pneg %p148
        $region62: #{tpu_custom_call.1} parent=51 // pred_check_branch
          %353 = sbr.rel (%p351) target = $region64
        $region63: #{tpu_custom_call.1} parent=51 // pred_region
          %355 = dma.done %s347, 128
        $region64: #{tpu_custom_call.1} parent=51 // pred_fallthru
          _
        %s356 = sand.u32 %s22, 1
        %s357 = scalar_lea.sflag [#allocation3], %s356
        %s358 = sand.u32 %s161, 1
        %s359 = smul.addr %s358, 16
        %s360 = scalar_lea.vmem [#allocation8], %s359
        // Predicated region
        $region65: #{tpu_custom_call.1} parent=51 // pred_check
          %p361 = pneg %p174
        $region66: #{tpu_custom_call.1} parent=51 // pred_check_branch
          %363 = sbr.rel (%p361) target = $region68
        $region67: #{tpu_custom_call.1} parent=51 // pred_region
          %365 = dma.done %s357, 256
        $region68: #{tpu_custom_call.1} parent=51 // pred_fallthru
          _
        %p366 = pneg %p38
        %p367 = pneg %p35
        %p368 = pneg %p59
        %p369 = pneg %p56
        %p370 = pneg %p80
        %p371 = pneg %p77
        %p372 = pneg %p101
        %p373 = pneg %p98
        %p374 = pneg %p122
        %p375 = pneg %p119
        %s376 = sand.u32 %s22, 1
        %s377 = scalar_lea.sflag [#allocation3], %s376
        %s378 = sand.u32 %s135, 1
        %s379 = smul.addr %s378, 8
        %s380 = scalar_lea.vmem [#allocation7], %s379
        %p381 = pneg %p148
        %p382 = pneg %p145
        %s383 = sand.u32 %s22, 1
        %s384 = scalar_lea.sflag [#allocation3], %s383
        %s385 = sand.u32 %s161, 1
        %s386 = smul.addr %s385, 16
        %s387 = scalar_lea.vmem [#allocation8], %s386
        %p388 = pneg %p174
        %p389 = pneg %p171
        %p390 = scmp.lt.s32.totalorder %s22, 2
        %s391 = scalar_select %p390, %s22, 2
        %s392 = smul.addr %s391, 2
        %s393 = smul.addr %s392, 8
        %s394 = scalar_lea.vmem %s7, %s393
        %p395 = pneg %p200
        %p396 = pneg %p197
        %p397 = pneg %p221
        %p398 = pneg %p218
        %p399 = scmp.lt.s32.totalorder %s22, 2
        %s400 = scalar_select %p399, %s22, 2
        %s401 = smul.addr %s400, 2
        %s402 = smul.addr %s401, 8
        %s403 = scalar_lea.vmem %s7, %s402
        %p405 = scmp.eq.s32.totalorder %s22, 0
        // Predicated region
        $region69: #{tpu_custom_call.1} parent=51 // pred_check
          %p406 = pneg %p405
        $region70: #{tpu_custom_call.1} parent=51 // pred_check_branch
          %408 = sbr.rel (%p406) target = $region72
        $region71: #{tpu_custom_call.1} parent=51 // pred_region
          %v409 = vld [vmem:[#allocation2] sm:$0xff]
          %v410 = vld [vmem:[#allocation2 + $0x8] sm:$0xff]
          %411 = vst [vmem:[#allocation9] sm:$0xff] %v409
          %412 = vst [vmem:[#allocation9 + $0x8] sm:$0xff] %v410
        $region72: #{tpu_custom_call.1} parent=51 // pred_fallthru
          _
        %v413 = vld [vmem:[#allocation9] sm:$0xff]
        %v414 = vld [vmem:[#allocation9 + $0x8] sm:$0xff]
        %v415 = vlaneseq
        %v416 = vand.u32 %v415, 127
        %v417 = vld [vmem:[%s2] sm:$0x1]
        %v419 = vperm.slane %v417, 0
        %v421 = vmul.f32 %v413, %v419
        %v422 = vmul.f32 %v414, %v419
        %423 = vadd.xlane.f32.xlu0 %v421
        %v424 = vpop.xlane.xlu0 %423
        %425 = vadd.xlane.f32.xlu0 %v422
        %v426 = vpop.xlane.xlu0 %425
        %vm427 = vcmp.eq.s32.totalorder %v416, 32
        %vm428 = vcmp.lt.s32.totalorder %v416, 32
        %v429 = vsel %vm428, 1, 0
        %vm430 = vcmp.eq.s32.totalorder %v429, 1
        %v431 = vsel %vm430, %v413, 0.0
        %v432 = vsel %vm430, %v414, 0.0
        %v433 = vsel %vm427, 1, 0
        %vm434 = vcmp.eq.s32.totalorder %v433, 1
        %v435 = vsel %vm434, %v424, %v431
        %v436 = vsel %vm434, %v426, %v432
        %v437 = vld [vmem:[%s350] sm:$0xf]
        %v438 = vld [vmem:[%s350 + $0x4] sm:$0xf]
        %v439 = vpack.c.bf16 %v436, %v435
        %v442 = vunpack.c.l.b16 %v437
        %v443 = vunpack.c.l.b16 %v438
        %v444 = vpack.c.b16 %v443, %v442
        %vm445 = vcmask 130048
        %v447 = vsel %vm445, %v444, 0
        %449 = vmatpush.bf16.msra.mxu0 0
        %450 = vmatpush.bf16.msra.mxu0 0
        %451 = vmatpush.bf16.msra.mxu0 0
        %452 = vmatpush.bf16.msra.mxu0 0
        %453 = vmatpush.bf16.msra.mxu0 0
        %454 = vmatpush.bf16.msra.mxu0 0
        %455 = vmatpush.bf16.msra.mxu0 0
        %456 = vmatpush.bf16.msra.mxu0 %v439
        %457 = vmatmul.bf16.gmra.mxu0 %v447
        %v458 = vpop.f32.mrf.mxu0
        %v459 = vadd.f32 0.0, %v458
        %v460 = vpop.f32.mrf.mxu0
        %v461 = vadd.f32 0.0, %v460
        %462 = vdwg.mxu0
        %v463 = vld [vmem:[%s403] sm:$0xff]
        %v464 = vld [vmem:[%s403 + $0x8] sm:$0xff]
        %v465 = vsel %vm434, %v459, 0.0
        %v466 = vsel %vm434, %v461, 0.0
        %467 = vadd.xlane.f32.xlu0 %v465
        %v468 = vpop.xlane.xlu0 %467
        %469 = vadd.xlane.f32.xlu0 %v466
        %v470 = vpop.xlane.xlu0 %469
        %v471 = vadd.f32 %v463, %v468
        %v472 = vadd.f32 %v464, %v470
        %vm473 = vcmask 7168
        %v474 = vsel %vm473, %v471, -inf
        %v475 = vsel %vm473, %v472, -inf
        %v476 = vmax.f32 %v474, %v475
        %v477 = vrot.slane %v476, 4
        %v478 = vmax.f32 %v476, %v477
        %v479 = vrot.slane %v478, 2
        %v480 = vmax.f32 %v478, %v479
        %v481 = vrot.slane %v480, 1
        %v482 = vmax.f32 %v480, %v481
        %v483 = vsub.f32 %v471, %v482
        %v484 = vsub.f32 %v472, %v482
        %v485 = vmul.f32 %v483, 1.442695
        %v486 = vpow.pop %v485
        %v487 = vmul.f32 %v484, 1.442695
        %v488 = vpow.pop %v487
        %490 = vset.pattern.permute.xlu0 0
        %491 = vperm.xlu0 %490, %v486
        %v492 = vpop.permute.xlu0 %491
        %495 = vset.pattern.permute.xlu0 0
        %496 = vperm.xlu0 %495, %v488
        %v497 = vpop.permute.xlu0 %496
        %v499 = vmul.f32 %v492, %v459
        %v500 = vmul.f32 %v497, %v461
        %vm501 = vcmp.eq.s32.totalorder %v416, 33
        %v502 = vsel %vm501, 1, 0
        %vm503 = vcmp.eq.s32.totalorder %v502, 1
        %v504 = vsel %vm503, %v492, 0.0
        %v505 = vsel %vm503, %v497, 0.0
        %v506 = vadd.f32 %v499, %v504
        %v507 = vadd.f32 %v500, %v505
        %vm508 = vcmp.eq.s32.totalorder %v416, 34
        %v509 = vsel %vm508, 1.0, 0.0
        %v510 = vadd.f32 %v506, %v509
        %v511 = vadd.f32 %v507, %v509
        %v512 = vld [vmem:[%s360] sm:$0xff]
        %v513 = vld [vmem:[%s360 + $0x8] sm:$0xff]
        %v515 = vsel %vm445, %v512, 0
        %v518 = vsel %vm445, %v513, 0
        %520 = vmatpush.msra.mxu0 0.0
        %521 = vmatpush.msra.mxu0 0.0
        %522 = vmatpush.msra.mxu0 0.0
        %523 = vmatpush.msra.mxu0 0.0
        %524 = vmatpush.msra.mxu0 0.0
        %525 = vmatpush.msra.mxu0 0.0
        %526 = vmatpush.msra.mxu0 0.0
        %527 = vmatpush.msra.mxu0 0.0
        %528 = vmatpush.msra.mxu0 0.0
        %529 = vmatpush.msra.mxu0 0.0
        %530 = vmatpush.msra.mxu0 0.0
        %531 = vmatpush.msra.mxu0 0.0
        %532 = vmatpush.msra.mxu0 0.0
        %533 = vmatpush.msra.mxu0 0.0
        %534 = vmatpush.msra.mxu0 %v511
        %535 = vmatpush.msra.mxu0 %v510
        %536 = vmatmul.f32.gmra.mxu0 %v515
        %v537 = vpop.f32.mrf.mxu0
        %v538 = vadd.f32 0.0, %v537
        %539 = vmatmul.f32.gmra.mxu0 %v518
        %v540 = vpop.f32.mrf.mxu0
        %v541 = vadd.f32 0.0, %v540
        %542 = vdwg.mxu0
        %v543 = vsel %vm503, %v538, 0.0
        %v544 = vsel %vm503, %v541, 0.0
        %545 = vadd.xlane.f32.xlu0 %v543
        %v546 = vpop.xlane.xlu0 %545
        %547 = vadd.xlane.f32.xlu0 %v544
        %v548 = vpop.xlane.xlu0 %547
        %v549 = vsel %vm508, 1, 0
        %vm550 = vcmp.eq.s32.totalorder %v549, 1
        %v551 = vsel %vm550, %v538, 0.0
        %v552 = vsel %vm550, %v541, 0.0
        %553 = vadd.xlane.f32.xlu0 %v551
        %v554 = vpop.xlane.xlu0 %553
        %555 = vadd.xlane.f32.xlu0 %v552
        %v556 = vpop.xlane.xlu0 %555
        %v557 = vadd.f32 %v546, 1e-16
        %v558 = vadd.f32 %v548, 1e-16
        %v559 = vrcp.pop %v557
        %v560 = vmul.f32 %v557, %v559
        %v561 = vsub.f32 1.0, %v560
        %v562 = vmul.f32 %v559, %v561
        %v563 = vadd.f32 %v559, %v562
        %vm564 = vweird.f32 %v557
        %vm565 = vweird.f32 %v559
        %vm566 = vmor %vm564, %vm565
        %v567 = vsel %vm566, %v559, %v563
        %v568 = vand.u32 2147483647, %v557
        %vm569 = vcmp.eq.f32.partialorder %v568, 8.507059e+37
        %v570 = vand.u32 %v557, 2147483648
        %v571 = vor.u32 1.1754944e-38, %v570
        %v572 = vsel %vm569, %v571, %v567
        %v573 = vmul.f32 %v538, %v572
        %v574 = vrcp.pop %v558
        %v575 = vmul.f32 %v558, %v574
        %v576 = vsub.f32 1.0, %v575
        %v577 = vmul.f32 %v574, %v576
        %v578 = vadd.f32 %v574, %v577
        %vm579 = vweird.f32 %v558
        %vm580 = vweird.f32 %v574
        %vm581 = vmor %vm579, %vm580
        %v582 = vsel %vm581, %v574, %v578
        %v583 = vand.u32 2147483647, %v558
        %vm584 = vcmp.eq.f32.partialorder %v583, 8.507059e+37
        %v585 = vand.u32 %v558, 2147483648
        %v586 = vor.u32 1.1754944e-38, %v585
        %v587 = vsel %vm584, %v586, %v582
        %v588 = vmul.f32 %v541, %v587
        %v589 = vld [vmem:[%s1] sm:$0xff]
        %v590 = vld [vmem:[%s1 + $0x8] sm:$0xff]
        %v591 = vld [vmem:[%s1 + $0x10] sm:$0xff]
        %v592 = vld [vmem:[%s1 + $0x18] sm:$0xff]
        %v593 = vld [vmem:[%s1 + $0x20] sm:$0xff]
        %v594 = vld [vmem:[%s1 + $0x28] sm:$0xff]
        %v595 = vpack.c.bf16 %v588, %v573
        %v596 = vld [vmem:[#allocation5] sm:$0xff]
        %v597 = vld [vmem:[#allocation5 + $0x8] sm:$0xf]
        %v598 = vld [vmem:[#allocation5 + $0xc] sm:$0xff]
        %v599 = vld [vmem:[#allocation5 + $0x14] sm:$0xf]
        %v600 = vld [vmem:[#allocation5 + $0x18] sm:$0xff]
        %v601 = vld [vmem:[#allocation5 + $0x20] sm:$0xf]
        %v602 = vld [vmem:[#allocation5 + $0x24] sm:$0xff]
        %v603 = vld [vmem:[#allocation5 + $0x2c] sm:$0xf]
        %v604 = vld [vmem:[#allocation5 + $0x30] sm:$0xff]
        %v605 = vld [vmem:[#allocation5 + $0x38] sm:$0xf]
        %v606 = vld [vmem:[#allocation5 + $0x3c] sm:$0xff]
        %v607 = vld [vmem:[#allocation5 + $0x44] sm:$0xf]
        %v608 = vld [vmem:[#allocation5 + $0x48] sm:$0xff]
        %v609 = vld [vmem:[#allocation5 + $0x50] sm:$0xf]
        %v610 = vld [vmem:[#allocation5 + $0x54] sm:$0xff]
        %v611 = vld [vmem:[#allocation5 + $0x5c] sm:$0xf]
        %v612 = vld [vmem:[#allocation5 + $0x60] sm:$0xff]
        %v613 = vld [vmem:[#allocation5 + $0x68] sm:$0xf]
        %v614 = vld [vmem:[#allocation5 + $0x6c] sm:$0xff]
        %v615 = vld [vmem:[#allocation5 + $0x74] sm:$0xf]
        %v616 = vld [vmem:[#allocation5 + $0x78] sm:$0xff]
        %v617 = vld [vmem:[#allocation5 + $0x80] sm:$0xf]
        %v618 = vld [vmem:[#allocation5 + $0x84] sm:$0xff]
        %v619 = vld [vmem:[#allocation5 + $0x8c] sm:$0xf]
        %v620 = vld [vmem:[#allocation5 + $0x90] sm:$0xff]
        %v621 = vld [vmem:[#allocation5 + $0x98] sm:$0xf]
        %v622 = vld [vmem:[#allocation5 + $0x9c] sm:$0xff]
        %v623 = vld [vmem:[#allocation5 + $0xa4] sm:$0xf]
        %v624 = vld [vmem:[#allocation5 + $0xa8] sm:$0xff]
        %v625 = vld [vmem:[#allocation5 + $0xb0] sm:$0xf]
        %v626 = vld [vmem:[#allocation5 + $0xb4] sm:$0xff]
        %v627 = vld [vmem:[#allocation5 + $0xbc] sm:$0xf]
        %v628 = vld [vmem:[%s4] sm:$0x7]
        %v630 = vperm.slane %v628, 0
        %v631 = vperm.slane %v628, 1
        %v632 = vperm.slane %v628, 2
        %v668 = vunpack.c.l.b16 %v596
        %v669 = vunpack.c.h.b16 %v596
        %v670 = vunpack.c.l.b16 %v597
        %v671 = vunpack.c.l.b16 %v598
        %v672 = vunpack.c.h.b16 %v598
        %v673 = vunpack.c.l.b16 %v599
        %v674 = vunpack.c.l.b16 %v600
        %v675 = vunpack.c.h.b16 %v600
        %v676 = vunpack.c.l.b16 %v601
        %v677 = vunpack.c.l.b16 %v602
        %v678 = vunpack.c.h.b16 %v602
        %v679 = vunpack.c.l.b16 %v603
        %v680 = vunpack.c.l.b16 %v604
        %v681 = vunpack.c.h.b16 %v604
        %v682 = vunpack.c.l.b16 %v605
        %v683 = vunpack.c.l.b16 %v606
        %v684 = vunpack.c.h.b16 %v606
        %v685 = vunpack.c.l.b16 %v607
        %v686 = vunpack.c.l.b16 %v608
        %v687 = vunpack.c.h.b16 %v608
        %v688 = vunpack.c.l.b16 %v609
        %v689 = vunpack.c.l.b16 %v610
        %v690 = vunpack.c.h.b16 %v610
        %v691 = vunpack.c.l.b16 %v611
        %v692 = vunpack.c.l.b16 %v612
        %v693 = vunpack.c.h.b16 %v612
        %v694 = vunpack.c.l.b16 %v613
        %v695 = vunpack.c.l.b16 %v614
        %v696 = vunpack.c.h.b16 %v614
        %v697 = vunpack.c.l.b16 %v615
        %v698 = vunpack.c.l.b16 %v616
        %v699 = vunpack.c.h.b16 %v616
        %v700 = vunpack.c.l.b16 %v617
        %v701 = vunpack.c.l.b16 %v618
        %v702 = vunpack.c.h.b16 %v618
        %v703 = vunpack.c.l.b16 %v619
        %v704 = vunpack.c.l.b16 %v620
        %v705 = vunpack.c.h.b16 %v620
        %v706 = vunpack.c.l.b16 %v621
        %v707 = vunpack.c.l.b16 %v622
        %v708 = vunpack.c.h.b16 %v622
        %v709 = vunpack.c.l.b16 %v623
        %v710 = vunpack.c.l.b16 %v624
        %v711 = vunpack.c.h.b16 %v624
        %v712 = vunpack.c.l.b16 %v625
        %v713 = vunpack.c.l.b16 %v626
        %v714 = vunpack.c.h.b16 %v626
        %v715 = vunpack.c.l.b16 %v627
        %v716 = vpack.c.b16 %v671, %v668
        %v717 = vpack.c.b16 %v672, %v669
        %v718 = vpack.c.b16 %v673, %v670
        %v719 = vpack.c.b16 %v677, %v674
        %v720 = vpack.c.b16 %v678, %v675
        %v721 = vpack.c.b16 %v679, %v676
        %v722 = vpack.c.b16 %v683, %v680
        %v723 = vpack.c.b16 %v684, %v681
        %v724 = vpack.c.b16 %v685, %v682
        %v725 = vpack.c.b16 %v689, %v686
        %v726 = vpack.c.b16 %v690, %v687
        %v727 = vpack.c.b16 %v691, %v688
        %v728 = vpack.c.b16 %v695, %v692
        %v729 = vpack.c.b16 %v696, %v693
        %v730 = vpack.c.b16 %v697, %v694
        %v731 = vpack.c.b16 %v701, %v698
        %v732 = vpack.c.b16 %v702, %v699
        %v733 = vpack.c.b16 %v703, %v700
        %v734 = vpack.c.b16 %v707, %v704
        %v735 = vpack.c.b16 %v708, %v705
        %v736 = vpack.c.b16 %v709, %v706
        %v737 = vpack.c.b16 %v713, %v710
        %v738 = vpack.c.b16 %v714, %v711
        %v739 = vpack.c.b16 %v715, %v712
        %764 = vmatpush.bf16.msra.mxu0 %v737
        %765 = vmatpush.bf16.msra.mxu0 %v734
        %766 = vmatpush.bf16.msra.mxu0 %v731
        %767 = vmatpush.bf16.msra.mxu0 %v728
        %768 = vmatpush.bf16.msra.mxu0 %v725
        %769 = vmatpush.bf16.msra.mxu0 %v722
        %770 = vmatpush.bf16.msra.mxu0 %v719
        %771 = vmatpush.bf16.msra.mxu0 %v716
        %772 = vmatmul.bf16.gmra.mxu0 %v595
        %v773 = vpop.f32.mrf.mxu0
        %v774 = vadd.f32 %v630, %v773
        %v775 = vpop.f32.mrf.mxu0
        %v776 = vadd.f32 %v630, %v775
        %777 = vdwg.mxu0
        %778 = vmatpush.bf16.msra.mxu0 %v738
        %779 = vmatpush.bf16.msra.mxu0 %v735
        %780 = vmatpush.bf16.msra.mxu0 %v732
        %781 = vmatpush.bf16.msra.mxu0 %v729
        %782 = vmatpush.bf16.msra.mxu0 %v726
        %783 = vmatpush.bf16.msra.mxu0 %v723
        %784 = vmatpush.bf16.msra.mxu0 %v720
        %785 = vmatpush.bf16.msra.mxu0 %v717
        %786 = vmatmul.bf16.gmra.mxu0 %v595
        %v787 = vpop.f32.mrf.mxu0
        %v788 = vadd.f32 %v631, %v787
        %v789 = vpop.f32.mrf.mxu0
        %v790 = vadd.f32 %v631, %v789
        %791 = vdwg.mxu0
        %792 = vmatpush.bf16.msra.mxu0 %v739
        %793 = vmatpush.bf16.msra.mxu0 %v736
        %794 = vmatpush.bf16.msra.mxu0 %v733
        %795 = vmatpush.bf16.msra.mxu0 %v730
        %796 = vmatpush.bf16.msra.mxu0 %v727
        %797 = vmatpush.bf16.msra.mxu0 %v724
        %798 = vmatpush.bf16.msra.mxu0 %v721
        %799 = vmatpush.bf16.msra.mxu0 %v718
        %800 = vmatmul.bf16.gmra.mxu0 %v595
        %v801 = vpop.f32.mrf.mxu0
        %v802 = vadd.f32 %v632, %v801
        %v803 = vpop.f32.mrf.mxu0
        %v804 = vadd.f32 %v632, %v803
        %805 = vdwg.mxu0
        %v806 = vadd.f32 %v589, %v774
        %v807 = vadd.f32 %v592, %v776
        %v808 = vxor.u32 %v806, 2147483648
        %v809 = vxor.u32 %v807, 2147483648
        %v810 = vmul.f32 %v808, 1.442695
        %v811 = vpow.pop %v810
        %v812 = vmul.f32 %v809, 1.442695
        %v813 = vpow.pop %v812
        %v814 = vadd.f32 %v811, 1.0
        %v815 = vadd.f32 %v813, 1.0
        %v816 = vrcp.pop %v814
        %v817 = vmul.f32 %v814, %v816
        %v818 = vsub.f32 1.0, %v817
        %v819 = vmul.f32 %v816, %v818
        %v820 = vadd.f32 %v816, %v819
        %vm821 = vweird.f32 %v814
        %vm822 = vweird.f32 %v816
        %vm823 = vmor %vm821, %vm822
        %v824 = vsel %vm823, %v816, %v820
        %v825 = vand.u32 2147483647, %v814
        %vm826 = vcmp.eq.f32.partialorder %v825, 8.507059e+37
        %v827 = vand.u32 %v814, 2147483648
        %v828 = vor.u32 1.1754944e-38, %v827
        %v829 = vsel %vm826, %v828, %v824
        %v830 = vmul.f32 1.0, %v829
        %v831 = vrcp.pop %v815
        %v832 = vmul.f32 %v815, %v831
        %v833 = vsub.f32 1.0, %v832
        %v834 = vmul.f32 %v831, %v833
        %v835 = vadd.f32 %v831, %v834
        %vm836 = vweird.f32 %v815
        %vm837 = vweird.f32 %v831
        %vm838 = vmor %vm836, %vm837
        %v839 = vsel %vm838, %v831, %v835
        %v840 = vand.u32 2147483647, %v815
        %vm841 = vcmp.eq.f32.partialorder %v840, 8.507059e+37
        %v842 = vand.u32 %v815, 2147483648
        %v843 = vor.u32 1.1754944e-38, %v842
        %v844 = vsel %vm841, %v843, %v839
        %v845 = vmul.f32 1.0, %v844
        %v846 = vadd.f32 %v590, %v788
        %v847 = vadd.f32 %v593, %v790
        %v848 = vxor.u32 %v846, 2147483648
        %v849 = vxor.u32 %v847, 2147483648
        %v850 = vmul.f32 %v848, 1.442695
        %v851 = vpow.pop %v850
        %v852 = vmul.f32 %v849, 1.442695
        %v853 = vpow.pop %v852
        %v854 = vadd.f32 %v851, 1.0
        %v855 = vadd.f32 %v853, 1.0
        %v856 = vrcp.pop %v854
        %v857 = vmul.f32 %v854, %v856
        %v858 = vsub.f32 1.0, %v857
        %v859 = vmul.f32 %v856, %v858
        %v860 = vadd.f32 %v856, %v859
        %vm861 = vweird.f32 %v854
        %vm862 = vweird.f32 %v856
        %vm863 = vmor %vm861, %vm862
        %v864 = vsel %vm863, %v856, %v860
        %v865 = vand.u32 2147483647, %v854
        %vm866 = vcmp.eq.f32.partialorder %v865, 8.507059e+37
        %v867 = vand.u32 %v854, 2147483648
        %v868 = vor.u32 1.1754944e-38, %v867
        %v869 = vsel %vm866, %v868, %v864
        %v870 = vmul.f32 1.0, %v869
        %v871 = vrcp.pop %v855
        %v872 = vmul.f32 %v855, %v871
        %v873 = vsub.f32 1.0, %v872
        %v874 = vmul.f32 %v871, %v873
        %v875 = vadd.f32 %v871, %v874
        %vm876 = vweird.f32 %v855
        %vm877 = vweird.f32 %v871
        %vm878 = vmor %vm876, %vm877
        %v879 = vsel %vm878, %v871, %v875
        %v880 = vand.u32 2147483647, %v855
        %vm881 = vcmp.eq.f32.partialorder %v880, 8.507059e+37
        %v882 = vand.u32 %v855, 2147483648
        %v883 = vor.u32 1.1754944e-38, %v882
        %v884 = vsel %vm881, %v883, %v879
        %v885 = vmul.f32 1.0, %v884
        %v886 = vmul.f32 %v830, %v802
        %v887 = vmul.f32 %v845, %v804
        %v888 = vadd.f32 %v591, %v886
        %v889 = vadd.f32 %v594, %v887
        %v890 = vtanh.pop %v888
        %v891 = vtanh.pop %v889
        %v892 = vsub.f32 1.0, %v870
        %v893 = vsub.f32 1.0, %v885
        %v894 = vmul.f32 %v892, %v890
        %v895 = vmul.f32 %v893, %v891
        %v896 = vmul.f32 %v870, %v573
        %v897 = vmul.f32 %v885, %v588
        %v898 = vadd.f32 %v894, %v896
        %v899 = vadd.f32 %v895, %v897
        %vm900 = vcmp.gt.f32.partialorder %v554, 0.5
        %vm901 = vcmp.gt.f32.partialorder %v556, 0.5
        %v902 = vsel %vm900, 1, 0
        %v903 = vsel %vm901, 1, 0
        %vm904 = vcmp.eq.s32.totalorder %v902, 1
        %vm905 = vcmp.eq.s32.totalorder %v903, 1
        %v906 = vsel %vm904, %v898, %v413
        %v907 = vsel %vm905, %v899, %v414
        %908 = vst [vmem:[#allocation9] sm:$0xff] %v906
        %909 = vst [vmem:[#allocation9 + $0x8] sm:$0xff] %v907
        // Predicated region
        $region73: #{tpu_custom_call.1} parent=51 // pred_check
          %p910 = pneg %p218
        $region74: #{tpu_custom_call.1} parent=51 // pred_check_branch
          %912 = sbr.rel (%p910) target = $region76
        $region75: #{tpu_custom_call.1} parent=51 // pred_region
          %914 = vsyncadd [#allocation4], 0
          %s915 = sshll.u32 [#allocation9], 4
          %s916 = int_to_ptr.vmem [resolvable:$true] %s915
          %s917 = sshll.u32 %s8, 4
          %s918 = int_to_ptr.hbm [resolvable:$true] %s917
          %923 = dma.vmem_to_hbm [thread:$0]  %s916, 256, %s918, [#allocation4], 128, 128, 8
        $region76: #{tpu_custom_call.1} parent=51 // pred_fallthru
          _
        // Predicated region
        $region77: #{tpu_custom_call.1} parent=51 // pred_check
          %p924 = pneg %p218
        $region78: #{tpu_custom_call.1} parent=51 // pred_check_branch
          %926 = sbr.rel (%p924) target = $region80
        $region79: #{tpu_custom_call.1} parent=51 // pred_region
          %928 = dma.done [#allocation4], 256
        $region80: #{tpu_custom_call.1} parent=51 // pred_fallthru
          _
      $region52: #{tpu_custom_call.1} parent=5 // pred_fallthru
        _
      %p929 = scmp.le.s32.totalorder 2, %s17
      // Predicated region
      $region81: #{tpu_custom_call.1} parent=5 // pred_check
        %p930 = pneg %p929
      $region82: #{tpu_custom_call.1} parent=5 // pred_check_branch
        %932 = sbr.rel (%p930) target = $region84
      $region83: #{tpu_custom_call.1} parent=5 // pred_region
        %s933 = ssub.s32 %s17, 2
      $region84: #{tpu_custom_call.1} parent=5 // pred_fallthru
        _
    $region6: #{tpu_custom_call.1} parent=1 // loop_footer
      %s21 = sadd.s32 1, %s17
    $region7: #{tpu_custom_call.1} parent=1 // loop_footer_branch
      %16 = sbr.rel target = $region3
    $region8: #{tpu_custom_call.1} parent=1 // loop_exit
      _
    %934 = vsyncpa [#allocation3], 1
    %s935 = scalar_lea.sflag [#allocation3], 1
    %936 = vsyncpa %s935, 1
    %937 = vsyncpa [#allocation6], 1
    %938 = vsyncpa [#allocation4], 1
    %s939 = scalar_lea.sflag [#allocation4], 1
    %940 = vsyncpa %s939, 1

</llo_original>
